<compile_context>
chip_gen: v7x
topology: tpu7x:2x2x1
jax: 0.10.0
libtpu: 0.0.40
codegen_flags: <defaults>
</compile_context>

<pallas_src>
import jax
import jax.numpy as jnp
from jax.experimental import pallas as pl
from jax.experimental.pallas import tpu as pltpu


def _round_up(x, m):
    return ((x + m - 1) // m) * m


def _make_policy_kernel(n_linear: int, out_size: int, out_pad: int):
    """Fused MLP + softmax kernel.

    Kernel ref order: x, W0, b0, W1, b1, ..., W_{n-1}, b_{n-1}, out
    ReLU after every Linear except the last, then softmax over the true
    (unpadded) last axis.  All feature dims arrive zero-padded to multiples of
    128; padded lanes are exactly zero through the MLP and are masked out of
    the softmax, then dropped before the (true-width) store.
    """

    def kernel(*refs):
        x_ref = refs[0]
        o_ref = refs[-1]
        p_refs = refs[1:-1]

        h = x_ref[...]                                   # bf16, lane-dense
        for i in range(n_linear):
            w = p_refs[2 * i][...]                       # bf16 (in_pad, out_pad_i)
            b = p_refs[2 * i + 1][...]                   # f32  (1, out_pad_i)
            # Feed the MXU in the weights' dtype (bf16), accumulate in f32.
            h = jnp.dot(h.astype(w.dtype), w,
                        preferred_element_type=jnp.float32) + b
            if i < n_linear - 1:
                h = jnp.maximum(h, 0.0)

        # Numerically stable softmax restricted to the true `out_size` lanes.
        if out_size != out_pad:
            lane = jax.lax.broadcasted_iota(jnp.int32, h.shape, 1)
            valid = lane < out_size
            h = jnp.where(valid, h, -1e30)               # exclude pad from max
        m = jnp.max(h, axis=-1, keepdims=True)
        e = jnp.exp(h - m)
        if out_size != out_pad:
            e = jnp.where(valid, e, 0.0)                 # exact zeros, any dtype
        s = jnp.sum(e, axis=-1, keepdims=True)
        probs = e * pl.reciprocal(s, approx=True)        # divide on the EUP
        if out_size != out_pad:
            probs = probs[:, :out_size]                  # true-width store only
        o_ref[...] = probs.astype(o_ref.dtype)

    return kernel


def machine_policy_forward(x, params, *, block_m=512,
                           param_dtype=jnp.bfloat16):
    """MachinePolicyNet forward pass in one Pallas call.

    x:      (batch, input_size) float32
    params: list of (W, b) with W: (in, out) = nn.Linear.weight.T,
            b: (out,) or (1, out)
    returns (batch, output_size) float32 softmax probabilities.
    """
    n_linear = len(params)
    batch, in_size = x.shape
    out_size = params[-1][0].shape[1]

    # --- feature-dim padding: every feature dim -> multiple of 128 so every
    #     activation / MXU feed is lane-dense.  (On v6e/v7x, multiples of 256
    #     can be preferred when the hidden dim is already >= 256.)
    in_pad = _round_up(in_size, 128)
    out_pad = _round_up(out_size, 128)

    # --- batch tiling: tm is a multiple of 8; keep it big enough to amortize
    #     the ~0.35us/step overhead but split into >= 2 grid steps when the
    #     batch allows it so both v7x TensorCores get work.
    batch8 = _round_up(batch, 8)
    tm = min(block_m, batch8)
    if batch8 >= 16 and batch8 <= tm:
        tm = _round_up(batch8 // 2, 8)
    batch_pad = _round_up(batch8, tm)

    # --- input: pad batch + feature dims, cast to bf16 (halves streamed DMA).
    x_p = jnp.pad(x, ((0, batch_pad - batch), (0, in_pad - in_size)))
    x_p = x_p.astype(param_dtype)

    # --- params: zero-pad every dim to a multiple of 128 (exact numerics).
    flat_params = []
    for (w, b) in params:
        fi, fo = w.shape
        pi, po = _round_up(fi, 128), _round_up(fo, 128)
        w = jnp.pad(w.astype(param_dtype), ((0, pi - fi), (0, po - fo)))
        b = jnp.pad(jnp.asarray(b, jnp.float32).reshape(1, -1),
                    ((0, 0), (0, po - fo)))
        flat_params += [w, b]

    kernel = _make_policy_kernel(n_linear, out_size, out_pad)

    # x / out stream over the batch grid; weights & biases are VMEM-resident
    # (constant block index => DMA'd once) and single-buffered to halve their
    # VMEM footprint.
    in_specs = [pl.BlockSpec((tm, in_pad), lambda i: (i, 0))]
    for p in flat_params:
        in_specs.append(pl.BlockSpec(p.shape, lambda i: (0, 0),
                                     pipeline_mode=pl.Buffered(1)))
    # True-width output store: last block dim equals the full array dim (legal
    # even when not a multiple of 128) -> no padded-lane HBM writeback.
    out_specs = pl.BlockSpec((tm, out_size), lambda i: (i, 0))

    # Explicit VMEM budget so the resident-weight design works on v5e's 16 MiB
    # default scoped limit and stays within v7x's 64 MiB physical VMEM.
    param_bytes = sum(int(p.size) * p.dtype.itemsize for p in flat_params)
    max_feat = max([in_pad] + [w.shape[1] for w in flat_params[0::2]])
    needed = (param_bytes
              + 2 * tm * in_pad * 2          # double-buffered bf16 x tile
              + 2 * tm * out_size * 4        # double-buffered f32 out tile
              + 4 * tm * max_feat * 4)       # live f32 intermediates
    vmem_limit = int(min(64 * 2**20, max(32 * 2**20, needed * 3 // 2)))

    flops = 2 * batch_pad * sum(w.shape[0] * w.shape[1]
                                for w in flat_params[0::2])
    bytes_accessed = (x_p.size * x_p.dtype.itemsize
                      + param_bytes
                      + batch_pad * out_size * 4)

    out = pl.pallas_call(
        kernel,
        out_shape=jax.ShapeDtypeStruct((batch_pad, out_size), jnp.float32),
        grid=(batch_pad // tm,),
        in_specs=in_specs,
        out_specs=out_specs,
        compiler_params=pltpu.CompilerParams(
            # batch tiles are independent -> shard across TCs on v7x.
            dimension_semantics=("parallel",),
            vmem_limit_bytes=vmem_limit),
        cost_estimate=pl.CostEstimate(
            flops=flops,
            transcendentals=batch_pad * out_pad,
            bytes_accessed=bytes_accessed),
    )(x_p, *flat_params)

    # Strip batch padding added for tiling (feature dim already true width).
    return out[:batch, :]


def init_policy_params(key, input_size, hidden_size, hidden_layer, output_size,
                       param_dtype=jnp.bfloat16):
    """Parameter init mirroring MachinePolicyNet.__init__ shapes.

    Layers: Linear(input, hidden) + ReLU, (hidden_layer-1) x [Linear(hidden,
    hidden) + ReLU], Linear(hidden, output).  Weights stored (in, out) in
    bf16; biases (1, out) in f32.  Values use PyTorch-style U(-1/sqrt(fan_in),
    1/sqrt(fan_in)) init (synthetic, not a checkpoint).
    """
    dims = [input_size] + [hidden_size] * hidden_layer + [output_size]
    params = []
    for i in range(len(dims) - 1):
        fan_in, fan_out = dims[i], dims[i + 1]
        key, kw, kb = jax.random.split(key, 3)
        bound = 1.0 / jnp.sqrt(jnp.float32(fan_in))
        w = jax.random.uniform(kw, (fan_in, fan_out), jnp.float32, -bound, bound)
        b = jax.random.uniform(kb, (1, fan_out), jnp.float32, -bound, bound)
        params.append((w.astype(param_dtype), b))
    return params


def machine_policy_forward_ref(x, params):
    """Pure-JAX reference (same bf16-weight / f32-accumulate semantics).

    NOTE: bf16 MXU feed with f32 accumulation is intentionally lower precision
    than a pure-f32 PyTorch MachinePolicyNet (acceptable for a policy net).
    """
    h = x
    n = len(params)
    for i, (w, b) in enumerate(params):
        h = jnp.dot(h.astype(w.dtype), w,
                    preferred_element_type=jnp.float32)
        h = h + jnp.asarray(b, jnp.float32).reshape(1, -1)
        if i < n - 1:
            h = jnp.maximum(h, 0.0)
    m = jnp.max(h, axis=-1, keepdims=True)
    e = jnp.exp(h - m)
    return e / jnp.sum(e, axis=-1, keepdims=True)


if __name__ == "__main__":
    # Small shapes consistent with MachinePolicyNet(input_size_2, hidden_size,
    # hidden_layer_2, output_size_2): batch=2, input=16, hidden=32,
    # 2 hidden layers, 4 actions.
    batch = 2
    input_size = 16
    hidden_size = 32
    hidden_layer = 2
    output_size = 4

    key = jax.random.PRNGKey(0)
    key, kx = jax.random.split(key)
    x = jax.random.normal(kx, (batch, input_size), jnp.float32)

    params = init_policy_params(key, input_size, hidden_size, hidden_layer,
                                output_size)

    out = machine_policy_forward(x, params)
    out = jax.block_until_ready(out)

    ref = machine_policy_forward_ref(x, params)
    assert out.shape == (batch, output_size)
    # Tolerance accounts for the approx (EUP) reciprocal in the softmax divide.
    assert jnp.allclose(out, ref, atol=2e-3, rtol=2e-3)
    assert jnp.allclose(jnp.sum(out, axis=-1), 1.0, atol=2e-3)

    print("KERNEL_OK")
</pallas_src>

<mosaic_0001>
module attributes {stable_mosaic.version = 11 : i64} {
  func.func @kernel(%arg0: i32, %arg1: memref<8x128xbf16, #tpu.memory_space<vmem>>, %arg2: memref<128x128xbf16, #tpu.memory_space<vmem>>, %arg3: memref<1x128xf32, #tpu.memory_space<vmem>>, %arg4: memref<128x128xbf16, #tpu.memory_space<vmem>>, %arg5: memref<1x128xf32, #tpu.memory_space<vmem>>, %arg6: memref<128x128xbf16, #tpu.memory_space<vmem>>, %arg7: memref<1x128xf32, #tpu.memory_space<vmem>>, %arg8: memref<8x4xf32, #tpu.memory_space<vmem>>) attributes {dimension_semantics = [#tpu.dimension_semantics<parallel>], iteration_bounds = array<i64: 1>, scalar_prefetch = 0 : i64, scratch_operands = 0 : i64, tpu.core_type = #tpu.core_type<tc>, window_params = [{transform_indices = @transform_0, window_bounds = array<i64: 8, 128>}, {pipeline_mode = #tpu.pipeline_mode<synchronous>, transform_indices = @transform_1, window_bounds = array<i64: 128, 128>}, {pipeline_mode = #tpu.pipeline_mode<synchronous>, transform_indices = @transform_2, window_bounds = array<i64: 1, 128>}, {pipeline_mode = #tpu.pipeline_mode<synchronous>, transform_indices = @transform_3, window_bounds = array<i64: 128, 128>}, {pipeline_mode = #tpu.pipeline_mode<synchronous>, transform_indices = @transform_4, window_bounds = array<i64: 1, 128>}, {pipeline_mode = #tpu.pipeline_mode<synchronous>, transform_indices = @transform_5, window_bounds = array<i64: 128, 128>}, {pipeline_mode = #tpu.pipeline_mode<synchronous>, transform_indices = @transform_6, window_bounds = array<i64: 1, 128>}, {transform_indices = @transform_7, window_bounds = array<i64: 8, 4>}]} {
    %c0 = arith.constant 0 : index
    %c0_0 = arith.constant 0 : index
    %0 = vector.load %arg1[%c0, %c0_0] : memref<8x128xbf16, #tpu.memory_space<vmem>>, vector<8x128xbf16>
    %c0_1 = arith.constant 0 : index
    %c0_2 = arith.constant 0 : index
    %1 = vector.load %arg2[%c0_1, %c0_2] : memref<128x128xbf16, #tpu.memory_space<vmem>>, vector<128x128xbf16>
    %c0_3 = arith.constant 0 : index
    %c0_4 = arith.constant 0 : index
    %2 = vector.load %arg3[%c0_3, %c0_4] : memref<1x128xf32, #tpu.memory_space<vmem>>, vector<1x128xf32>
    %cst = arith.constant dense<0.000000e+00> : vector<8x128xf32>
    %3 = tpu.matmul %0, %1, %cst {dimension_numbers = #tpu.dot_dimension_numbers<[1], [0], [0], [1], [0, 0, 1, 1], [], []>} : vector<8x128xbf16>, vector<128x128xbf16>, vector<8x128xf32> -> vector<8x128xf32>
    %4 = vector.broadcast %2 : vector<1x128xf32> to vector<8x128xf32>
    %5 = arith.addf %3, %4 : vector<8x128xf32>
    %cst_5 = arith.constant 0.000000e+00 : f32
    %6 = vector.broadcast %cst_5 : f32 to vector<8x128xf32>
    %7 = arith.maximumf %5, %6 : vector<8x128xf32>
    %c0_6 = arith.constant 0 : index
    %c0_7 = arith.constant 0 : index
    %8 = vector.load %arg4[%c0_6, %c0_7] : memref<128x128xbf16, #tpu.memory_space<vmem>>, vector<128x128xbf16>
    %c0_8 = arith.constant 0 : index
    %c0_9 = arith.constant 0 : index
    %9 = vector.load %arg5[%c0_8, %c0_9] : memref<1x128xf32, #tpu.memory_space<vmem>>, vector<1x128xf32>
    %10 = arith.truncf %7 : vector<8x128xf32> to vector<8x128xbf16>
    %cst_10 = arith.constant dense<0.000000e+00> : vector<8x128xf32>
    %11 = tpu.matmul %10, %8, %cst_10 {dimension_numbers = #tpu.dot_dimension_numbers<[1], [0], [0], [1], [0, 0, 1, 1], [], []>} : vector<8x128xbf16>, vector<128x128xbf16>, vector<8x128xf32> -> vector<8x128xf32>
    %12 = vector.broadcast %9 : vector<1x128xf32> to vector<8x128xf32>
    %13 = arith.addf %11, %12 : vector<8x128xf32>
    %cst_11 = arith.constant 0.000000e+00 : f32
    %14 = vector.broadcast %cst_11 : f32 to vector<8x128xf32>
    %15 = arith.maximumf %13, %14 : vector<8x128xf32>
    %c0_12 = arith.constant 0 : index
    %c0_13 = arith.constant 0 : index
    %16 = vector.load %arg6[%c0_12, %c0_13] : memref<128x128xbf16, #tpu.memory_space<vmem>>, vector<128x128xbf16>
    %c0_14 = arith.constant 0 : index
    %c0_15 = arith.constant 0 : index
    %17 = vector.load %arg7[%c0_14, %c0_15] : memref<1x128xf32, #tpu.memory_space<vmem>>, vector<1x128xf32>
    %18 = arith.truncf %15 : vector<8x128xf32> to vector<8x128xbf16>
    %cst_16 = arith.constant dense<0.000000e+00> : vector<8x128xf32>
    %19 = tpu.matmul %18, %16, %cst_16 {dimension_numbers = #tpu.dot_dimension_numbers<[1], [0], [0], [1], [0, 0, 1, 1], [], []>} : vector<8x128xbf16>, vector<128x128xbf16>, vector<8x128xf32> -> vector<8x128xf32>
    %20 = vector.broadcast %17 : vector<1x128xf32> to vector<8x128xf32>
    %21 = arith.addf %19, %20 : vector<8x128xf32>
    %22 = tpu.iota {dimensions = array<i32: 1>} : vector<8x128xi32>
    %c4_i32 = arith.constant 4 : i32
    %23 = vector.broadcast %c4_i32 : i32 to vector<8x128xi32>
    %24 = arith.cmpi slt, %22, %23 : vector<8x128xi32>
    %cst_17 = arith.constant -1.000000e+30 : f32
    %25 = vector.broadcast %cst_17 : f32 to vector<8x128xf32>
    %26 = arith.select %24, %21, %25 : vector<8x128xi1>, vector<8x128xf32>
    %cst_18 = arith.constant dense<0xFF800000> : vector<8xf32>
    %27 = vector.multi_reduction <maximumf>, %26, %cst_18 [1] : vector<8x128xf32> to vector<8xf32>
    %28 = vector.shape_cast %27 : vector<8xf32> to vector<8x1xf32>
    %29 = vector.broadcast %28 : vector<8x1xf32> to vector<8x128xf32>
    %30 = arith.subf %26, %29 : vector<8x128xf32>
    %31 = math.exp %30 : vector<8x128xf32>
    %cst_19 = arith.constant 0.000000e+00 : f32
    %32 = vector.broadcast %cst_19 : f32 to vector<8x128xf32>
    %33 = arith.select %24, %31, %32 : vector<8x128xi1>, vector<8x128xf32>
    %cst_20 = arith.constant dense<0.000000e+00> : vector<8xf32>
    %34 = vector.multi_reduction <add>, %33, %cst_20 [1] : vector<8x128xf32> to vector<8xf32>
    %35 = vector.shape_cast %34 : vector<8xf32> to vector<8x1xf32>
    %36 = tpu.reciprocal %35 {approx = true} : vector<8x1xf32> -> vector<8x1xf32>
    %37 = vector.broadcast %36 : vector<8x1xf32> to vector<8x128xf32>
    %38 = arith.mulf %33, %37 : vector<8x128xf32>
    %39 = vector.extract_strided_slice %38 {offsets = [0, 0], sizes = [8, 4], strides = [1, 1]} : vector<8x128xf32> to vector<8x4xf32>
    %c0_21 = arith.constant 0 : index
    %c0_22 = arith.constant 0 : index
    %40 = vector.load %arg8[%c0_21, %c0_22] : memref<8x4xf32, #tpu.memory_space<vmem>>, vector<8x4xf32>
    tpu.vector_store %arg8[%c0_21, %c0_22], %39 {strides = array<i32>} : memref<8x4xf32, #tpu.memory_space<vmem>>, vector<8x4xf32>,
    return
  }
  func.func @transform_0(%arg0: i32) -> (i32, i32) {
    %c0_i32 = arith.constant 0 : i32
    %c0_i32_0 = arith.constant 0 : i32
    return %arg0, %c0_i32 : i32, i32
  }
  func.func @transform_1(%arg0: i32) -> (i32, i32) {
    %c0_i32 = arith.constant 0 : i32
    %c0_i32_0 = arith.constant 0 : i32
    %c0_i32_1 = arith.constant 0 : i32
    return %c0_i32, %c0_i32_0 : i32, i32
  }
  func.func @transform_2(%arg0: i32) -> (i32, i32) {
    %c0_i32 = arith.constant 0 : i32
    %c0_i32_0 = arith.constant 0 : i32
    %c0_i32_1 = arith.constant 0 : i32
    return %c0_i32, %c0_i32_0 : i32, i32
  }
  func.func @transform_3(%arg0: i32) -> (i32, i32) {
    %c0_i32 = arith.constant 0 : i32
    %c0_i32_0 = arith.constant 0 : i32
    %c0_i32_1 = arith.constant 0 : i32
    return %c0_i32, %c0_i32_0 : i32, i32
  }
  func.func @transform_4(%arg0: i32) -> (i32, i32) {
    %c0_i32 = arith.constant 0 : i32
    %c0_i32_0 = arith.constant 0 : i32
    %c0_i32_1 = arith.constant 0 : i32
    return %c0_i32, %c0_i32_0 : i32, i32
  }
  func.func @transform_5(%arg0: i32) -> (i32, i32) {
    %c0_i32 = arith.constant 0 : i32
    %c0_i32_0 = arith.constant 0 : i32
    %c0_i32_1 = arith.constant 0 : i32
    return %c0_i32, %c0_i32_0 : i32, i32
  }
  func.func @transform_6(%arg0: i32) -> (i32, i32) {
    %c0_i32 = arith.constant 0 : i32
    %c0_i32_0 = arith.constant 0 : i32
    %c0_i32_1 = arith.constant 0 : i32
    return %c0_i32, %c0_i32_0 : i32, i32
  }
  func.func @transform_7(%arg0: i32) -> (i32, i32) {
    %c0_i32 = arith.constant 0 : i32
    %c0_i32_0 = arith.constant 0 : i32
    return %arg0, %c0_i32 : i32, i32
  }
}

</mosaic_0001>

<llo_original>
// kernel: tpu_custom_call.1
$region0: #{tpu_custom_call.1}
  #allocation0 [shape = 'u32[]', space=smem, size = 0x4, offset = 0x4, fixed_abs, tag = 'smem constant byte address 0x4 - core index']
  #allocation1 [shape = 'u32[144,128]{1,0:T(1,128)}', space=vmem, size = 0x12000, scoped, tag = 'internal scratch']
  %s0 = inlined_call_operand.hbm [shape: bf16[8,128], index: 0, kind: input, shape index: {}]
  %s1 = inlined_call_operand.hbm [shape: bf16[128,128], index: 1, kind: input, shape index: {}]
  %s2 = inlined_call_operand.vmem [shape: f32[1,128], index: 2, kind: input, shape index: {}]
  %s3 = inlined_call_operand.hbm [shape: bf16[128,128], index: 3, kind: input, shape index: {}]
  %s4 = inlined_call_operand.vmem [shape: f32[1,128], index: 4, kind: input, shape index: {}]
  %s5 = inlined_call_operand.hbm [shape: bf16[128,128], index: 5, kind: input, shape index: {}]
  %s6 = inlined_call_operand.vmem [shape: f32[1,128], index: 6, kind: input, shape index: {}]
  %s7 = inlined_call_operand.vmem [shape: f32[8,4], index: 7, kind: output, shape index: {}]
  %s8 = sld [smem:[#allocation0]]
  $region54: #{tpu_custom_call.1} parent=0
    _
  %s10 = ssub.s32 1, %s8
  %s11 = scalar_select 0, %s10, %s8
  $region1: #{tpu_custom_call.1} parent=0
    #allocation2 [shape = 'u8[2048]{0}', space=vmem, size = 0x800, scoped, tag = 'input window, operand 0, single buffered']
    #allocation3 [shape = 's32[1]{0}', space=sflag, size = 0x4, scoped, tag = 'scoped memory for tpu_custom_call.1']
    #allocation4 [shape = 'u8[32768]{0}', space=vmem, size = 0x8000, scoped, tag = 'input window, operand 1, single buffered']
    #allocation5 [shape = 's32[1]{0}', space=sflag, size = 0x4, scoped, tag = 'scoped memory for tpu_custom_call.1']
    #allocation6 [shape = 'u8[32768]{0}', space=vmem, size = 0x8000, scoped, tag = 'input window, operand 3, single buffered']
    #allocation7 [shape = 'u8[32768]{0}', space=vmem, size = 0x8000, scoped, tag = 'input window, operand 5, single buffered']
    #allocation8 [shape = 's32[1]{0}', space=sflag, size = 0x4, scoped, tag = 'scoped memory for tpu_custom_call.1']
    %12 = vsyncpa [#allocation3], 0
    %13 = vsyncpa [#allocation5], 0
    %14 = vsyncpa [#allocation8], 0
    // Predicated region
    $region2: #{tpu_custom_call.1} parent=1 // pred_check
      _
    $region3: #{tpu_custom_call.1} parent=1 // pred_check_branch
      %16 = sbr.rel (0) target = $region5
    $region4: #{tpu_custom_call.1} parent=1 // pred_region
      %s18 = ssub.s32 64, 64
      %19 = vsyncadd [#allocation3], %s18
      %s21 = sshll.u32 [#allocation2], 4
      %s22 = int_to_ptr.vmem [resolvable:$true] %s21
      %24 = dma.hbm_to_vmem [thread:$0]  %s0, 64, %s22, [#allocation3]
    $region5: #{tpu_custom_call.1} parent=1 // pred_fallthru
      _
    // Predicated region
    $region6: #{tpu_custom_call.1} parent=1 // pred_check
      _
    $region7: #{tpu_custom_call.1} parent=1 // pred_check_branch
      %26 = sbr.rel (0) target = $region9
    $region8: #{tpu_custom_call.1} parent=1 // pred_region
      %s28 = ssub.s32 1024, 1024
      %29 = vsyncadd [#allocation5], %s28
      %s30 = sshll.u32 [#allocation4], 4
      %s31 = int_to_ptr.vmem [resolvable:$true] %s30
      %36 = dma.hbm_to_vmem [thread:$0]  %s1, 1024, %s31, [#allocation5], 64, 64, 4
    $region9: #{tpu_custom_call.1} parent=1 // pred_fallthru
      _
    // Predicated region
    $region10: #{tpu_custom_call.1} parent=1 // pred_check
      _
    $region11: #{tpu_custom_call.1} parent=1 // pred_check_branch
      %38 = sbr.rel (0) target = $region13
    $region12: #{tpu_custom_call.1} parent=1 // pred_region
      _
    $region13: #{tpu_custom_call.1} parent=1 // pred_fallthru
      _
    // Predicated region
    $region14: #{tpu_custom_call.1} parent=1 // pred_check
      _
    $region15: #{tpu_custom_call.1} parent=1 // pred_check_branch
      %40 = sbr.rel (0) target = $region17
    $region16: #{tpu_custom_call.1} parent=1 // pred_region
      %s42 = ssub.s32 1024, 1024
      %43 = vsyncadd [#allocation5], %s42
      %s44 = sshll.u32 [#allocation6], 4
      %s45 = int_to_ptr.vmem [resolvable:$true] %s44
      %50 = dma.hbm_to_vmem [thread:$0]  %s3, 1024, %s45, [#allocation5], 64, 64, 4
    $region17: #{tpu_custom_call.1} parent=1 // pred_fallthru
      _
    // Predicated region
    $region18: #{tpu_custom_call.1} parent=1 // pred_check
      _
    $region19: #{tpu_custom_call.1} parent=1 // pred_check_branch
      %52 = sbr.rel (0) target = $region21
    $region20: #{tpu_custom_call.1} parent=1 // pred_region
      _
    $region21: #{tpu_custom_call.1} parent=1 // pred_fallthru
      _
    // Predicated region
    $region22: #{tpu_custom_call.1} parent=1 // pred_check
      _
    $region23: #{tpu_custom_call.1} parent=1 // pred_check_branch
      %54 = sbr.rel (0) target = $region25
    $region24: #{tpu_custom_call.1} parent=1 // pred_region
      %s56 = ssub.s32 1024, 1024
      %57 = vsyncadd [#allocation8], %s56
      %s58 = sshll.u32 [#allocation7], 4
      %s59 = int_to_ptr.vmem [resolvable:$true] %s58
      %64 = dma.hbm_to_vmem [thread:$0]  %s5, 1024, %s59, [#allocation8], 64, 64, 4
    $region25: #{tpu_custom_call.1} parent=1 // pred_fallthru
      _
    // Predicated region
    $region26: #{tpu_custom_call.1} parent=1 // pred_check
      _
    $region27: #{tpu_custom_call.1} parent=1 // pred_check_branch
      %66 = sbr.rel (0) target = $region29
    $region28: #{tpu_custom_call.1} parent=1 // pred_region
      _
    $region29: #{tpu_custom_call.1} parent=1 // pred_fallthru
      _
    // Predicated region
    $region30: #{tpu_custom_call.1} parent=1 // pred_check
      _
    $region31: #{tpu_custom_call.1} parent=1 // pred_check_branch
      %68 = sbr.rel (0) target = $region33
    $region32: #{tpu_custom_call.1} parent=1 // pred_region
      %69 = dma.done [#allocation3], 64
    $region33: #{tpu_custom_call.1} parent=1 // pred_fallthru
      _
    // Predicated region
    $region34: #{tpu_custom_call.1} parent=1 // pred_check
      _
    $region35: #{tpu_custom_call.1} parent=1 // pred_check_branch
      %71 = sbr.rel (0) target = $region37
    $region36: #{tpu_custom_call.1} parent=1 // pred_region
      %72 = dma.done [#allocation5], 1024
    $region37: #{tpu_custom_call.1} parent=1 // pred_fallthru
      _
    // Predicated region
    $region38: #{tpu_custom_call.1} parent=1 // pred_check
      _
    $region39: #{tpu_custom_call.1} parent=1 // pred_check_branch
      %74 = sbr.rel (0) target = $region41
    $region40: #{tpu_custom_call.1} parent=1 // pred_region
      %75 = dma.done [#allocation5], 1024
    $region41: #{tpu_custom_call.1} parent=1 // pred_fallthru
      _
    // Predicated region
    $region42: #{tpu_custom_call.1} parent=1 // pred_check
      _
    $region43: #{tpu_custom_call.1} parent=1 // pred_check_branch
      %77 = sbr.rel (0) target = $region45
    $region44: #{tpu_custom_call.1} parent=1 // pred_region
      %78 = dma.done [#allocation8], 1024
    $region45: #{tpu_custom_call.1} parent=1 // pred_fallthru
      _
    %v80 = vld [vmem:[#allocation2] sm:$0xf]
    %v81 = vld [vmem:[#allocation4] sm:$0xf]
    %v82 = vld [vmem:[#allocation4 + $0x4] sm:$0xf]
    %v83 = vld [vmem:[#allocation4 + $0x8] sm:$0xf]
    %v84 = vld [vmem:[#allocation4 + $0xc] sm:$0xf]
    %v85 = vld [vmem:[#allocation4 + $0x10] sm:$0xf]
    %v86 = vld [vmem:[#allocation4 + $0x14] sm:$0xf]
    %v87 = vld [vmem:[#allocation4 + $0x18] sm:$0xf]
    %v88 = vld [vmem:[#allocation4 + $0x1c] sm:$0xf]
    %v89 = vld [vmem:[#allocation4 + $0x20] sm:$0xf]
    %v90 = vld [vmem:[#allocation4 + $0x24] sm:$0xf]
    %v91 = vld [vmem:[#allocation4 + $0x28] sm:$0xf]
    %v92 = vld [vmem:[#allocation4 + $0x2c] sm:$0xf]
    %v93 = vld [vmem:[#allocation4 + $0x30] sm:$0xf]
    %v94 = vld [vmem:[#allocation4 + $0x34] sm:$0xf]
    %v95 = vld [vmem:[#allocation4 + $0x38] sm:$0xf]
    %v96 = vld [vmem:[#allocation4 + $0x3c] sm:$0xf]
    %v97 = vld [vmem:[%s2] sm:$0x1]
    %v99 = vlaneseq
    %v100 = vshrl.u32 %v99, 7
    %v101 = vsub.s32 0, %v100
    %v102 = vrot.slane %v97, %v101
    %v120 = vunpack.c.l.b16 %v81
    %v121 = vunpack.c.l.b16 %v82
    %v122 = vunpack.c.l.b16 %v83
    %v123 = vunpack.c.l.b16 %v84
    %v124 = vunpack.c.l.b16 %v85
    %v125 = vunpack.c.l.b16 %v86
    %v126 = vunpack.c.l.b16 %v87
    %v127 = vunpack.c.l.b16 %v88
    %v128 = vunpack.c.l.b16 %v89
    %v129 = vunpack.c.l.b16 %v90
    %v130 = vunpack.c.l.b16 %v91
    %v131 = vunpack.c.l.b16 %v92
    %v132 = vunpack.c.l.b16 %v93
    %v133 = vunpack.c.l.b16 %v94
    %v134 = vunpack.c.l.b16 %v95
    %v135 = vunpack.c.l.b16 %v96
    %v136 = vpack.c.b16 %v121, %v120
    %v137 = vpack.c.b16 %v123, %v122
    %v138 = vpack.c.b16 %v125, %v124
    %v139 = vpack.c.b16 %v127, %v126
    %v140 = vpack.c.b16 %v129, %v128
    %v141 = vpack.c.b16 %v131, %v130
    %v142 = vpack.c.b16 %v133, %v132
    %v143 = vpack.c.b16 %v135, %v134
    %152 = vmatprep.subr.bf16.mxu0 0
    %153 = vmatpush1.bf16.msra.mxu0 %v136
    %154 = vmatprep.subr.bf16.mxu0 0
    %155 = vmatpush1.bf16.msra.mxu0 %v137
    %156 = vmatprep.subr.bf16.mxu0 0
    %157 = vmatpush1.bf16.msra.mxu0 %v138
    %158 = vmatprep.subr.bf16.mxu0 0
    %159 = vmatpush1.bf16.msra.mxu0 %v139
    %160 = vmatprep.subr.bf16.mxu0 0
    %161 = vmatpush1.bf16.msra.mxu0 %v140
    %162 = vmatprep.subr.bf16.mxu0 0
    %163 = vmatpush1.bf16.msra.mxu0 %v141
    %164 = vmatprep.subr.bf16.mxu0 0
    %165 = vmatpush1.bf16.msra.mxu0 %v142
    %166 = vmatprep.subr.bf16.mxu0 0
    %167 = vmatpush1.bf16.msra.mxu0 %v143
    %168 = vmatprep.subr.bf16.mxu0 0
    %169 = vmatpush1.bf16.msra.mxu0 0
    %170 = vmatprep.subr.bf16.mxu0 0
    %171 = vmatpush1.bf16.msra.mxu0 0
    %172 = vmatprep.subr.bf16.mxu0 0
    %173 = vmatpush1.bf16.msra.mxu0 0
    %174 = vmatprep.subr.bf16.mxu0 0
    %175 = vmatpush1.bf16.msra.mxu0 0
    %176 = vmatprep.subr.bf16.mxu0 0
    %177 = vmatpush1.bf16.msra.mxu0 0
    %178 = vmatprep.subr.bf16.mxu0 0
    %179 = vmatpush1.bf16.msra.mxu0 0
    %180 = vmatprep.subr.bf16.mxu0 0
    %181 = vmatpush1.bf16.msra.mxu0 0
    %182 = vmatprep.subr.bf16.mxu0 0
    %183 = vmatpush1.bf16.msra.mxu0 0
    %184 = vmatprep.mubr.bf16.mxu0 0
    %185 = vmatmul.mubr.bf16.gmra.mrb[0].mxu0 %v80
    %v186 = vpop.f32.mrb[0].mxu0
    %v187 = vadd.f32 %v102, %v186
    %v188 = vpop.f32.mrb[0].mxu0
    %v189 = vpop.f32.mrb[0].mxu0
    %v190 = vpop.f32.mrb[0].mxu0
    %191 = vdwg.mxu0
    %v192 = vmax.f32 %v187, 0.0
    %v193 = vld [vmem:[#allocation6] sm:$0xf]
    %v194 = vld [vmem:[#allocation6 + $0x4] sm:$0xf]
    %v195 = vld [vmem:[#allocation6 + $0x8] sm:$0xf]
    %v196 = vld [vmem:[#allocation6 + $0xc] sm:$0xf]
    %v197 = vld [vmem:[#allocation6 + $0x10] sm:$0xf]
    %v198 = vld [vmem:[#allocation6 + $0x14] sm:$0xf]
    %v199 = vld [vmem:[#allocation6 + $0x18] sm:$0xf]
    %v200 = vld [vmem:[#allocation6 + $0x1c] sm:$0xf]
    %v201 = vld [vmem:[#allocation6 + $0x20] sm:$0xf]
    %v202 = vld [vmem:[#allocation6 + $0x24] sm:$0xf]
    %v203 = vld [vmem:[#allocation6 + $0x28] sm:$0xf]
    %v204 = vld [vmem:[#allocation6 + $0x2c] sm:$0xf]
    %v205 = vld [vmem:[#allocation6 + $0x30] sm:$0xf]
    %v206 = vld [vmem:[#allocation6 + $0x34] sm:$0xf]
    %v207 = vld [vmem:[#allocation6 + $0x38] sm:$0xf]
    %v208 = vld [vmem:[#allocation6 + $0x3c] sm:$0xf]
    %v209 = vld [vmem:[%s4] sm:$0x1]
    %v210 = vpack.c.bf16 %v192, %v192
    %v212 = vlaneseq
    %v213 = vshrl.u32 %v212, 7
    %v214 = vsub.s32 0, %v213
    %v215 = vrot.slane %v209, %v214
    %v233 = vunpack.c.l.b16 %v193
    %v234 = vunpack.c.l.b16 %v194
    %v235 = vunpack.c.l.b16 %v195
    %v236 = vunpack.c.l.b16 %v196
    %v237 = vunpack.c.l.b16 %v197
    %v238 = vunpack.c.l.b16 %v198
    %v239 = vunpack.c.l.b16 %v199
    %v240 = vunpack.c.l.b16 %v200
    %v241 = vunpack.c.l.b16 %v201
    %v242 = vunpack.c.l.b16 %v202
    %v243 = vunpack.c.l.b16 %v203
    %v244 = vunpack.c.l.b16 %v204
    %v245 = vunpack.c.l.b16 %v205
    %v246 = vunpack.c.l.b16 %v206
    %v247 = vunpack.c.l.b16 %v207
    %v248 = vunpack.c.l.b16 %v208
    %v249 = vpack.c.b16 %v234, %v233
    %v250 = vpack.c.b16 %v236, %v235
    %v251 = vpack.c.b16 %v238, %v237
    %v252 = vpack.c.b16 %v240, %v239
    %v253 = vpack.c.b16 %v242, %v241
    %v254 = vpack.c.b16 %v244, %v243
    %v255 = vpack.c.b16 %v246, %v245
    %v256 = vpack.c.b16 %v248, %v247
    %265 = vmatprep.subr.bf16.mxu0 0
    %266 = vmatpush1.bf16.msra.mxu0 %v249
    %267 = vmatprep.subr.bf16.mxu0 0
    %268 = vmatpush1.bf16.msra.mxu0 %v250
    %269 = vmatprep.subr.bf16.mxu0 0
    %270 = vmatpush1.bf16.msra.mxu0 %v251
    %271 = vmatprep.subr.bf16.mxu0 0
    %272 = vmatpush1.bf16.msra.mxu0 %v252
    %273 = vmatprep.subr.bf16.mxu0 0
    %274 = vmatpush1.bf16.msra.mxu0 %v253
    %275 = vmatprep.subr.bf16.mxu0 0
    %276 = vmatpush1.bf16.msra.mxu0 %v254
    %277 = vmatprep.subr.bf16.mxu0 0
    %278 = vmatpush1.bf16.msra.mxu0 %v255
    %279 = vmatprep.subr.bf16.mxu0 0
    %280 = vmatpush1.bf16.msra.mxu0 %v256
    %281 = vmatprep.subr.bf16.mxu0 0
    %282 = vmatpush1.bf16.msra.mxu0 0
    %283 = vmatprep.subr.bf16.mxu0 0
    %284 = vmatpush1.bf16.msra.mxu0 0
    %285 = vmatprep.subr.bf16.mxu0 0
    %286 = vmatpush1.bf16.msra.mxu0 0
    %287 = vmatprep.subr.bf16.mxu0 0
    %288 = vmatpush1.bf16.msra.mxu0 0
    %289 = vmatprep.subr.bf16.mxu0 0
    %290 = vmatpush1.bf16.msra.mxu0 0
    %291 = vmatprep.subr.bf16.mxu0 0
    %292 = vmatpush1.bf16.msra.mxu0 0
    %293 = vmatprep.subr.bf16.mxu0 0
    %294 = vmatpush1.bf16.msra.mxu0 0
    %295 = vmatprep.subr.bf16.mxu0 0
    %296 = vmatpush1.bf16.msra.mxu0 0
    %297 = vmatprep.mubr.bf16.mxu0 0
    %298 = vmatmul.mubr.bf16.gmra.mrb[0].mxu0 %v210
    %v299 = vpop.f32.mrb[0].mxu0
    %v300 = vadd.f32 %v215, %v299
    %v301 = vpop.f32.mrb[0].mxu0
    %v302 = vpop.f32.mrb[0].mxu0
    %v303 = vpop.f32.mrb[0].mxu0
    %304 = vdwg.mxu0
    %v305 = vmax.f32 %v300, 0.0
    %v306 = vld [vmem:[#allocation7] sm:$0xf]
    %v307 = vld [vmem:[#allocation7 + $0x4] sm:$0xf]
    %v308 = vld [vmem:[#allocation7 + $0x8] sm:$0xf]
    %v309 = vld [vmem:[#allocation7 + $0xc] sm:$0xf]
    %v310 = vld [vmem:[#allocation7 + $0x10] sm:$0xf]
    %v311 = vld [vmem:[#allocation7 + $0x14] sm:$0xf]
    %v312 = vld [vmem:[#allocation7 + $0x18] sm:$0xf]
    %v313 = vld [vmem:[#allocation7 + $0x1c] sm:$0xf]
    %v314 = vld [vmem:[#allocation7 + $0x20] sm:$0xf]
    %v315 = vld [vmem:[#allocation7 + $0x24] sm:$0xf]
    %v316 = vld [vmem:[#allocation7 + $0x28] sm:$0xf]
    %v317 = vld [vmem:[#allocation7 + $0x2c] sm:$0xf]
    %v318 = vld [vmem:[#allocation7 + $0x30] sm:$0xf]
    %v319 = vld [vmem:[#allocation7 + $0x34] sm:$0xf]
    %v320 = vld [vmem:[#allocation7 + $0x38] sm:$0xf]
    %v321 = vld [vmem:[#allocation7 + $0x3c] sm:$0xf]
    %v322 = vld [vmem:[%s6] sm:$0x1]
    %v323 = vpack.c.bf16 %v305, %v305
    %v325 = vlaneseq
    %v326 = vshrl.u32 %v325, 7
    %v327 = vsub.s32 0, %v326
    %v328 = vrot.slane %v322, %v327
    %v346 = vunpack.c.l.b16 %v306
    %v347 = vunpack.c.l.b16 %v307
    %v348 = vunpack.c.l.b16 %v308
    %v349 = vunpack.c.l.b16 %v309
    %v350 = vunpack.c.l.b16 %v310
    %v351 = vunpack.c.l.b16 %v311
    %v352 = vunpack.c.l.b16 %v312
    %v353 = vunpack.c.l.b16 %v313
    %v354 = vunpack.c.l.b16 %v314
    %v355 = vunpack.c.l.b16 %v315
    %v356 = vunpack.c.l.b16 %v316
    %v357 = vunpack.c.l.b16 %v317
    %v358 = vunpack.c.l.b16 %v318
    %v359 = vunpack.c.l.b16 %v319
    %v360 = vunpack.c.l.b16 %v320
    %v361 = vunpack.c.l.b16 %v321
    %v362 = vpack.c.b16 %v347, %v346
    %v363 = vpack.c.b16 %v349, %v348
    %v364 = vpack.c.b16 %v351, %v350
    %v365 = vpack.c.b16 %v353, %v352
    %v366 = vpack.c.b16 %v355, %v354
    %v367 = vpack.c.b16 %v357, %v356
    %v368 = vpack.c.b16 %v359, %v358
    %v369 = vpack.c.b16 %v361, %v360
    %378 = vmatprep.subr.bf16.mxu0 0
    %379 = vmatpush1.bf16.msra.mxu0 %v362
    %380 = vmatprep.subr.bf16.mxu0 0
    %381 = vmatpush1.bf16.msra.mxu0 %v363
    %382 = vmatprep.subr.bf16.mxu0 0
    %383 = vmatpush1.bf16.msra.mxu0 %v364
    %384 = vmatprep.subr.bf16.mxu0 0
    %385 = vmatpush1.bf16.msra.mxu0 %v365
    %386 = vmatprep.subr.bf16.mxu0 0
    %387 = vmatpush1.bf16.msra.mxu0 %v366
    %388 = vmatprep.subr.bf16.mxu0 0
    %389 = vmatpush1.bf16.msra.mxu0 %v367
    %390 = vmatprep.subr.bf16.mxu0 0
    %391 = vmatpush1.bf16.msra.mxu0 %v368
    %392 = vmatprep.subr.bf16.mxu0 0
    %393 = vmatpush1.bf16.msra.mxu0 %v369
    %394 = vmatprep.subr.bf16.mxu0 0
    %395 = vmatpush1.bf16.msra.mxu0 0
    %396 = vmatprep.subr.bf16.mxu0 0
    %397 = vmatpush1.bf16.msra.mxu0 0
    %398 = vmatprep.subr.bf16.mxu0 0
    %399 = vmatpush1.bf16.msra.mxu0 0
    %400 = vmatprep.subr.bf16.mxu0 0
    %401 = vmatpush1.bf16.msra.mxu0 0
    %402 = vmatprep.subr.bf16.mxu0 0
    %403 = vmatpush1.bf16.msra.mxu0 0
    %404 = vmatprep.subr.bf16.mxu0 0
    %405 = vmatpush1.bf16.msra.mxu0 0
    %406 = vmatprep.subr.bf16.mxu0 0
    %407 = vmatpush1.bf16.msra.mxu0 0
    %408 = vmatprep.subr.bf16.mxu0 0
    %409 = vmatpush1.bf16.msra.mxu0 0
    %410 = vmatprep.mubr.bf16.mxu0 0
    %411 = vmatmul.mubr.bf16.gmra.mrb[0].mxu0 %v323
    %v412 = vpop.f32.mrb[0].mxu0
    %v413 = vadd.f32 %v328, %v412
    %v414 = vpop.f32.mrb[0].mxu0
    %v415 = vpop.f32.mrb[0].mxu0
    %v416 = vpop.f32.mrb[0].mxu0
    %417 = vdwg.mxu0
    %v418 = vlaneseq
    %v419 = vand.u32 %v418, 127
    %vm420 = vcmp.lt.s32.totalorder %v419, 4
    %v421 = vsel %vm420, %v413, -1e+30
    %422 = vmax.xlane.f32.xlu0 %v421
    %v423 = vpop.xlane.xlu0 %422
    %v424 = vsub.f32 %v421, %v423
    %v425 = vmul.f32 %v424, 1.442695
    %v426 = vpow.pop %v425
    %v427 = vsel %vm420, %v426, 0.0
    %428 = vadd.xlane.f32.xlu0 %v427
    %v429 = vpop.xlane.xlu0 %428
    %v430 = vrcp.pop %v429
    %v431 = vmul.f32 %v427, %v430
    %vm432 = vcmask 31744
    %433 = vst.msk [vmem:[%s7] sm:$0xff] %vm432, %v431
    // Predicated region
    $region46: #{tpu_custom_call.1} parent=1 // pred_check
      _
    $region47: #{tpu_custom_call.1} parent=1 // pred_check_branch
      %435 = sbr.rel (0) target = $region49
    $region48: #{tpu_custom_call.1} parent=1 // pred_region
      _
    $region49: #{tpu_custom_call.1} parent=1 // pred_fallthru
      _
    // Predicated region
    $region50: #{tpu_custom_call.1} parent=1 // pred_check
      _
    $region51: #{tpu_custom_call.1} parent=1 // pred_check_branch
      %437 = sbr.rel (0) target = $region53
    $region52: #{tpu_custom_call.1} parent=1 // pred_region
      _
    $region53: #{tpu_custom_call.1} parent=1 // pred_fallthru
      _
    %438 = vsyncpa [#allocation3], 1
    %439 = vsyncpa [#allocation5], 1
    %440 = vsyncpa [#allocation8], 1

</llo_original>
